<compile_context>
chip_gen: v6e
topology: v6e:2x2x1
jax: 0.10.0
libtpu: 0.0.40
codegen_flags: <defaults>
</compile_context>

<pallas_src>
import numpy as np
import jax
import jax.numpy as jnp
from jax.experimental import pallas as pl
from jax.experimental.pallas import tpu as pltpu


# ----------------------------------------------------------------------------
# Deterministic parameter construction (mirrors phasor.__init__ / parpareparam)
# ----------------------------------------------------------------------------
def waveconvparam(bin_resolution, virtual_wavelength, cycles):
    c = 3e8
    samples = int(round(cycles * virtual_wavelength / (c * bin_resolution)))
    num_cycles = samples * (c * bin_resolution) / virtual_wavelength
    sigma = 0.3
    grids = np.arange(1, samples + 1, dtype=np.float64)
    sin_wave = np.sin(2.0 * np.pi * (num_cycles * grids) / samples)
    cos_wave = np.cos(2.0 * np.pi * (num_cycles * grids) / samples)
    # gaussian window (gausswin with alpha = 1/sigma)
    n = np.arange(samples, dtype=np.float64) - (samples - 1) / 2.0
    alpha = 1.0 / sigma
    gauss = np.exp(-0.5 * (alpha * n / ((samples - 1) / 2.0)) ** 2)
    return cos_wave * gauss, sin_wave * gauss


def definePsf(sptial_grid, temprol_grid, slope):
    N, M = sptial_grid, temprol_grid
    x = np.linspace(-1.0, 1.0, 2 * N)
    y = np.linspace(-1.0, 1.0, 2 * N)
    z = np.linspace(0.0, 2.0, 2 * M)
    grid_z, grid_y, grid_x = np.meshgrid(z, y, x, indexing="ij")  # [2M, 2N, 2N]
    psf = np.abs(((4.0 * slope) ** 2) * (grid_x ** 2 + grid_y ** 2) - grid_z)
    psf = (psf == psf.min(axis=0, keepdims=True)).astype(np.float64)
    psf = psf / np.sum(psf[:, N, N])
    psf = psf / np.linalg.norm(psf.ravel())
    psf = np.roll(psf, N, axis=1)
    psf = np.roll(psf, N, axis=2)
    return psf  # [2T, 2H, 2W]


def resamplingOperator(temprol_grid):
    M = temprol_grid
    row, col = M ** 2, M
    x = np.arange(1, row + 1, dtype=np.float64)
    mtx = np.zeros((row, col), dtype=np.float64)
    cols = np.ceil(np.sqrt(x)).astype(np.int64) - 1
    mtx[np.arange(row), cols] = 1.0
    mtx = mtx / np.sqrt(x)[:, None]
    mtxi = mtx.T.copy()
    K = int(round(np.log2(M)))
    for _ in range(K):
        mtx = 0.5 * (mtx[0::2, :] + mtx[1::2, :])
        mtxi = 0.5 * (mtxi[:, 0::2] + mtxi[:, 1::2])
    return mtx, mtxi  # float64 [T, T] each


class PhasorParams:
    """Equivalent of phasor.__init__ / parpareparam (deterministic, in-script)."""

    def __init__(self, spatial=8, crop=32, bin_len=0.16, wall_size=2.0,
                 sampling_coeff=2.0, cycles=5):
        assert 2 ** int(np.log2(crop)) == crop
        self.spatial_grid = spatial
        self.crop = crop
        c = 3e8
        self.width = wall_size / 2.0
        self.bin_resolution = bin_len / c
        self.trange = crop * c * self.bin_resolution

        s_lamda_limit = wall_size / (spatial - 1)
        virtual_wavelength = sampling_coeff * (s_lamda_limit * 2.0)
        cos_k, sin_k = waveconvparam(self.bin_resolution, virtual_wavelength, cycles)
        wave_2xk = np.stack([cos_k, sin_k], axis=0)[:, ::-1].copy()  # time-reversed
        self.wave_inv_2xk_f64 = wave_2xk                              # [2, K] float64

        slope = self.width / self.trange
        psf = definePsf(spatial, crop, slope)                         # [2T, 2H, 2W]
        fpsf = np.fft.fftn(psf)
        invpsf = np.conjugate(fpsf)                                   # Hermitian
        # Half spectrum along the last axis (for rfftn/irfftn): [2T, 2H, W+1].
        half = spatial + 1
        self.invpsf_half_real = np.real(invpsf)[:, :, :half].astype(np.float32)
        self.invpsf_half_imag = np.imag(invpsf)[:, :, :half].astype(np.float32)

        mtx_f64, mtxi_f64 = resamplingOperator(crop)                  # [T, T] float64
        self.mtxi_MxM = mtxi_f64.astype(np.float32)

        # Fused (conv Toeplitz @ resampling) operator, computed in float64 to stay
        # within tolerance of the two-GEMM reference rounding order, stored f32.
        Mc = self._conv_toeplitz_2xTxT_f64()                          # [2, T, T]
        w_cos = mtx_f64 @ Mc[0].T                                     # [T, T]
        w_sin = mtx_f64 @ Mc[1].T                                     # [T, T]
        self.fused_wave_resample_2TxT = np.concatenate(
            [w_cos, w_sin], axis=0).astype(np.float32)                # [2T, T]

    def _conv_toeplitz_2xTxT_f64(self):
        """Exact Toeplitz matrices reproducing F.conv1d(pad=K//2) (+ drop-first
        sample when K is even), so that  y[n, c, :] = x[n, :] @ M_c ."""
        T = self.crop
        K = self.wave_inv_2xk_f64.shape[1]
        pad = K // 2
        s = 1 if (K % 2 == 0) else 0
        i = np.arange(T)[:, None]     # input time index (rows)
        t = np.arange(T)[None, :]     # output time index (cols)
        idx = i - t - s + pad
        valid = (idx >= 0) & (idx < K)
        out = np.zeros((2, T, T), dtype=np.float64)
        for c in range(2):
            w = self.wave_inv_2xk_f64[c]
            out[c] = np.where(valid, w[np.clip(idx, 0, K - 1)], 0.0)
        return out


# ----------------------------------------------------------------------------
# Block-size helper
# ----------------------------------------------------------------------------
def _pick_lane_block(n, target=4096):
    """Largest multiple-of-128 divisor of n that is <= target, preferring one
    that yields >=2 grid steps (so both v7x TensorCores get work along the
    'parallel' axis).  Falls back to the full extent (always a legal block)."""
    if n % 128 != 0:
        return n   # full-extent fallback (masked stores; non-128-multiple N)
    best_any = None
    b = (min(target, n) // 128) * 128
    while b >= 128:
        if n % b == 0:
            if best_any is None:
                best_any = b
            if n // b >= 2:
                return b          # largest divisor giving >=2 grid steps
        b -= 128
    return best_any if best_any is not None else n


# ----------------------------------------------------------------------------
# Pallas kernels
# ----------------------------------------------------------------------------
def _conv_resample_kernel(w_ref, x_ref, o_ref):
    # w_ref: (2T, T)  x_ref: (T, blk_n)  o_ref: (2T, blk_n)   -- single fused GEMM
    o_ref[...] = jnp.dot(w_ref[...], x_ref[...],
                         preferred_element_type=jnp.float32)


def conv_resample(w_2T_T, x_T_N):
    T2, T = w_2T_T.shape
    _, N = x_T_N.shape
    blk_n = _pick_lane_block(N)
    flops = 2 * T2 * T * N
    bytes_accessed = 4 * (T * N + T2 * T + T2 * N)   # HBM-bound: X in, out
    return pl.pallas_call(
        _conv_resample_kernel,
        out_shape=jax.ShapeDtypeStruct((T2, N), jnp.float32),
        grid=(N // blk_n,),
        in_specs=[
            pl.BlockSpec((T2, T), lambda n: (0, 0)),       # resident fused operator
            pl.BlockSpec((T, blk_n), lambda n: (0, n)),    # X streamed exactly once
        ],
        out_specs=pl.BlockSpec((T2, blk_n), lambda n: (0, n)),
        compiler_params=pltpu.CompilerParams(dimension_semantics=("parallel",)),
        cost_estimate=pl.CostEstimate(flops=flops, transcendentals=0,
                                      bytes_accessed=bytes_accessed),
    )(w_2T_T, x_T_N)


def _mag_resample_kernel(mtxi_ref, cr_ref, sr_ref, o_ref):
    cr, sr = cr_ref[...], sr_ref[...]
    # The IFFT imaginary parts are exactly zero in exact arithmetic (product of
    # two Hermitian spectra), so the reference formula
    #   sqrt(relu((sqrt(sum_real^2 + sum_imag^2) + sum_real)/2))
    # collapses to sqrt(cr^2 + sr^2).
    s = jnp.sqrt(cr * cr + sr * sr)
    o_ref[...] = jnp.dot(mtxi_ref[...], s, preferred_element_type=jnp.float32)


def magnitude_resample(mtxi, vol_T_2N):
    # vol_T_2N: [T, 2N] batch-last, lane-dense; cos half = lanes [0, N),
    # sin half = lanes [N, 2N).  Both halves are read as two windows of the
    # SAME array (no explicit slice copies in HBM).
    T, twoN = vol_T_2N.shape
    N = twoN // 2
    flops = 2 * T * T * N + 3 * T * N
    bytes_accessed = 4 * (2 * T * N + T * N + T * T)
    spec_m = pl.BlockSpec((T, T), lambda n: (0, 0))
    if N % 128 == 0:
        blk = _pick_lane_block(N)
        nsteps = N // blk
        in_specs = [spec_m,
                    pl.BlockSpec((T, blk), lambda n: (0, n)),            # cos window
                    pl.BlockSpec((T, blk), lambda n: (0, n + nsteps))]   # sin window
        args = (mtxi, vol_T_2N, vol_T_2N)
    else:
        # Fallback for non-128-multiple N: split into two full-extent arrays.
        blk, nsteps = N, 1
        in_specs = [spec_m,
                    pl.BlockSpec((T, N), lambda n: (0, 0)),
                    pl.BlockSpec((T, N), lambda n: (0, 0))]
        args = (mtxi, vol_T_2N[:, :N], vol_T_2N[:, N:])
    return pl.pallas_call(
        _mag_resample_kernel,
        out_shape=jax.ShapeDtypeStruct((T, N), jnp.float32),
        grid=(nsteps,),
        in_specs=in_specs,
        out_specs=pl.BlockSpec((T, blk), lambda n: (0, n)),
        compiler_params=pltpu.CompilerParams(dimension_semantics=("parallel",)),
        cost_estimate=pl.CostEstimate(flops=flops, transcendentals=T * N,
                                      bytes_accessed=bytes_accessed),
    )(*args)


# ----------------------------------------------------------------------------
# Forward pass (glue in JAX, hot paths in Pallas)
# ----------------------------------------------------------------------------
def phasor_forward(feat_bxdxtxhxw, tbes, tens, p: PhasorParams):
    B, D, Tin, H, W = feat_bxdxtxhxw.shape
    T = p.crop
    assert H == W == p.spatial_grid
    BD = B * D
    N = BD * H * W

    # --- temporal zero-padding, built as per-batch pad + one stack (no repeated
    #     full-buffer dynamic-update-slices) in time-first layout [T,B,D,H,W] ---
    feat_t = jnp.moveaxis(feat_bxdxtxhxw.astype(jnp.float32), 2, 0)   # [Tin,B,D,H,W]
    slabs = []
    for i in range(B):
        tbe, ten = int(tbes[i]), int(tens[i])
        assert tbe >= 0 and ten <= T and ten - tbe == Tin
        slabs.append(jnp.pad(feat_t[:, i],
                             ((tbe, T - ten), (0, 0), (0, 0), (0, 0))))
    xpad = jnp.stack(slabs, axis=1)                                   # [T,B,D,H,W]
    x_T_N = xpad.reshape(T, N)        # time on sublanes, BD*H*W on lanes

    # --- fused cos/sin conv + resampling operator: one lane-dense GEMM ---
    w_2T_T = jnp.asarray(p.fused_wave_resample_2TxT)                  # [2T, T]
    tmp_2T_N = conv_resample(w_2T_T, x_T_N)                           # [2T, N]

    # rearrange to [2BD, T, H, W]
    tmp = (tmp_2T_N.reshape(2, T, BD, H, W)
           .transpose(0, 2, 1, 3, 4)
           .reshape(2 * BD, T, H, W))

    # TODO(synk): 3-D FFT/IFFT has no Pallas TPU primitive; computed with
    # jnp.fft.rfftn/irfftn (real input -> half spectrum), zero-padding to the
    # (2T,2H,2W) volume via `s=` (no explicit 8x datapad buffer).
    datafre = jnp.fft.rfftn(tmp, s=(2 * T, 2 * H, 2 * W),
                            axes=(-3, -2, -1))                        # [2BD,2T,2H,W+1]

    # Hermitian spectral multiply: single fused complex pass (perf review:
    # avoids jnp.real/jnp.imag materialization + recombine round-trips).
    invpsf = jax.lax.complex(jnp.asarray(p.invpsf_half_real),
                             jnp.asarray(p.invpsf_half_imag))         # [2T,2H,W+1]
    refre = datafre * invpsf[None]

    vol = jnp.fft.irfftn(refre, s=(2 * T, 2 * H, 2 * W),
                         axes=(-3, -2, -1))                           # [2BD,2T,2H,2W] f32
    vol = vol[:, :T, :H, :W]                                          # [2BD, T, H, W]

    # [2BD,T,H,W] -> [T, 2N] (batch-last, lane-dense); cos lanes [0,N), sin [N,2N)
    vol_t = jnp.transpose(vol, (1, 0, 2, 3)).reshape(T, 2 * N)

    mtxi = jnp.asarray(p.mtxi_MxM)                                    # [T, T]
    out_T_N = magnitude_resample(mtxi, vol_t)                         # [T, BD*HW]

    # default dataset path in the reference code: no extra transpose/rot90
    return out_T_N.reshape(T, B, D, H, W).transpose(1, 2, 0, 3, 4)    # [B,D,T,H,W]


# ----------------------------------------------------------------------------
if __name__ == "__main__":
    B, D, Tin, H, W = 2, 1, 16, 8, 8
    spatial, crop = 8, 32
    tbes, tens = [4, 8], [20, 24]

    params = PhasorParams(spatial=spatial, crop=crop, bin_len=0.16,
                          wall_size=2.0, sampling_coeff=2.0, cycles=5)

    key = jax.random.PRNGKey(0)
    feat = jax.random.uniform(key, (B, D, Tin, H, W), dtype=jnp.float32)

    fwd = jax.jit(lambda x: phasor_forward(x, tbes, tens, params))
    out = jax.block_until_ready(fwd(feat))

    assert out.shape == (B, D, crop, H, W), out.shape
    assert out.dtype == jnp.float32
    assert bool(jnp.all(jnp.isfinite(out)))
    print("KERNEL_OK")
</pallas_src>

<mosaic_0001>
module attributes {stable_mosaic.version = 11 : i64} {
  func.func @_conv_resample_kernel(%arg0: i32, %arg1: memref<64x32xf32, #tpu.memory_space<vmem>>, %arg2: memref<32x128xf32, #tpu.memory_space<vmem>>, %arg3: memref<64x128xf32, #tpu.memory_space<vmem>>) attributes {dimension_semantics = [#tpu.dimension_semantics<parallel>], iteration_bounds = array<i64: 1>, scalar_prefetch = 0 : i64, scratch_operands = 0 : i64, tpu.core_type = #tpu.core_type<tc>, window_params = [{pipeline_mode = #tpu.pipeline_mode<synchronous>, transform_indices = @transform_0, window_bounds = array<i64: 64, 32>}, {transform_indices = @transform_1, window_bounds = array<i64: 32, 128>}, {transform_indices = @transform_2, window_bounds = array<i64: 64, 128>}]} {
    %c0 = arith.constant 0 : index
    %c0_0 = arith.constant 0 : index
    %0 = vector.load %arg1[%c0, %c0_0] : memref<64x32xf32, #tpu.memory_space<vmem>>, vector<64x32xf32>
    %c0_1 = arith.constant 0 : index
    %c0_2 = arith.constant 0 : index
    %1 = vector.load %arg2[%c0_1, %c0_2] : memref<32x128xf32, #tpu.memory_space<vmem>>, vector<32x128xf32>
    %cst = arith.constant dense<0.000000e+00> : vector<64x128xf32>
    %2 = tpu.matmul %0, %1, %cst {dimension_numbers = #tpu.dot_dimension_numbers<[1], [0], [0], [1], [0, 0, 1, 1], [], []>} : vector<64x32xf32>, vector<32x128xf32>, vector<64x128xf32> -> vector<64x128xf32>
    %c0_3 = arith.constant 0 : index
    %c0_4 = arith.constant 0 : index
    %3 = vector.load %arg3[%c0_3, %c0_4] : memref<64x128xf32, #tpu.memory_space<vmem>>, vector<64x128xf32>
    tpu.vector_store %arg3[%c0_3, %c0_4], %2 {strides = array<i32>} : memref<64x128xf32, #tpu.memory_space<vmem>>, vector<64x128xf32>,
    return
  }
  func.func @transform_0(%arg0: i32) -> (i32, i32) {
    %c0_i32 = arith.constant 0 : i32
    %c0_i32_0 = arith.constant 0 : i32
    %c0_i32_1 = arith.constant 0 : i32
    return %c0_i32, %c0_i32_0 : i32, i32
  }
  func.func @transform_1(%arg0: i32) -> (i32, i32) {
    %c0_i32 = arith.constant 0 : i32
    %c0_i32_0 = arith.constant 0 : i32
    return %c0_i32, %arg0 : i32, i32
  }
  func.func @transform_2(%arg0: i32) -> (i32, i32) {
    %c0_i32 = arith.constant 0 : i32
    %c0_i32_0 = arith.constant 0 : i32
    return %c0_i32, %arg0 : i32, i32
  }
}

module attributes {stable_mosaic.version = 11 : i64} {
  func.func @_mag_resample_kernel(%arg0: i32, %arg1: memref<32x32xf32, #tpu.memory_space<vmem>>, %arg2: memref<32x128xf32, #tpu.memory_space<vmem>>, %arg3: memref<32x128xf32, #tpu.memory_space<vmem>>, %arg4: memref<32x128xf32, #tpu.memory_space<vmem>>) attributes {dimension_semantics = [#tpu.dimension_semantics<parallel>], iteration_bounds = array<i64: 1>, scalar_prefetch = 0 : i64, scratch_operands = 0 : i64, tpu.core_type = #tpu.core_type<tc>, window_params = [{pipeline_mode = #tpu.pipeline_mode<synchronous>, transform_indices = @transform_0, window_bounds = array<i64: 32, 32>}, {transform_indices = @transform_1, window_bounds = array<i64: 32, 128>}, {transform_indices = @transform_2, window_bounds = array<i64: 32, 128>}, {transform_indices = @transform_3, window_bounds = array<i64: 32, 128>}]} {
    %c0 = arith.constant 0 : index
    %c0_0 = arith.constant 0 : index
    %0 = vector.load %arg2[%c0, %c0_0] : memref<32x128xf32, #tpu.memory_space<vmem>>, vector<32x128xf32>
    %c0_1 = arith.constant 0 : index
    %c0_2 = arith.constant 0 : index
    %1 = vector.load %arg3[%c0_1, %c0_2] : memref<32x128xf32, #tpu.memory_space<vmem>>, vector<32x128xf32>
    %2 = arith.mulf %0, %0 : vector<32x128xf32>
    %3 = arith.mulf %1, %1 : vector<32x128xf32>
    %4 = arith.addf %2, %3 : vector<32x128xf32>
    %5 = math.sqrt %4 : vector<32x128xf32>
    %c0_3 = arith.constant 0 : index
    %c0_4 = arith.constant 0 : index
    %6 = vector.load %arg1[%c0_3, %c0_4] : memref<32x32xf32, #tpu.memory_space<vmem>>, vector<32x32xf32>
    %cst = arith.constant dense<0.000000e+00> : vector<32x128xf32>
    %7 = tpu.matmul %6, %5, %cst {dimension_numbers = #tpu.dot_dimension_numbers<[1], [0], [0], [1], [0, 0, 1, 1], [], []>} : vector<32x32xf32>, vector<32x128xf32>, vector<32x128xf32> -> vector<32x128xf32>
    %c0_5 = arith.constant 0 : index
    %c0_6 = arith.constant 0 : index
    %8 = vector.load %arg4[%c0_5, %c0_6] : memref<32x128xf32, #tpu.memory_space<vmem>>, vector<32x128xf32>
    tpu.vector_store %arg4[%c0_5, %c0_6], %7 {strides = array<i32>} : memref<32x128xf32, #tpu.memory_space<vmem>>, vector<32x128xf32>,
    return
  }
  func.func @transform_0(%arg0: i32) -> (i32, i32) {
    %c0_i32 = arith.constant 0 : i32
    %c0_i32_0 = arith.constant 0 : i32
    %c0_i32_1 = arith.constant 0 : i32
    return %c0_i32, %c0_i32_0 : i32, i32
  }
  func.func @transform_1(%arg0: i32) -> (i32, i32) {
    %c0_i32 = arith.constant 0 : i32
    %c0_i32_0 = arith.constant 0 : i32
    return %c0_i32, %arg0 : i32, i32
  }
  func.func @transform_2(%arg0: i32) -> (i32, i32) {
    %c1_i32 = arith.constant 1 : i32
    %0 = arith.addi %arg0, %c1_i32 : i32
    %c0_i32 = arith.constant 0 : i32
    %c0_i32_0 = arith.constant 0 : i32
    return %c0_i32, %0 : i32, i32
  }
  func.func @transform_3(%arg0: i32) -> (i32, i32) {
    %c0_i32 = arith.constant 0 : i32
    %c0_i32_0 = arith.constant 0 : i32
    return %c0_i32, %arg0 : i32, i32
  }
}

</mosaic_0001>

<llo_original>
// kernel: _lambda_.2
$region0: #{_lambda_.2}
  #allocation0 [shape = 'u32[]', space=smem, size = 0x4, offset = 0x4, fixed_abs, tag = 'smem constant byte address 0x4 - core index']
  #allocation1 [shape = 'u32[144,128]{1,0:T(1,128)}', space=vmem, size = 0x12000, scoped, tag = 'internal scratch']
  %s0 = inlined_call_operand.vmem [shape: f32[64,32], index: 0, kind: input, shape index: {}]
  %s1 = inlined_call_operand.vmem [shape: f32[32,128], index: 1, kind: input, shape index: {}]
  %s2 = inlined_call_operand.vmem [shape: f32[64,128], index: 2, kind: output, shape index: {}]
  %s3 = sld [smem:[#allocation0]]
  $region18: #{_lambda_.2} parent=0
    _
  %s5 = ssub.s32 1, %s3
  %s6 = scalar_select 0, %s5, %s3
  // Predicated region
  $region2: #{_lambda_.2} parent=0 // pred_check
    _
  $region3: #{_lambda_.2} parent=0 // pred_check_branch
    %8 = sbr.rel (0) target = $region5
  $region4: #{_lambda_.2} parent=0 // pred_region
    _
  $region5: #{_lambda_.2} parent=0 // pred_fallthru
    _
  // Predicated region
  $region6: #{_lambda_.2} parent=0 // pred_check
    _
  $region7: #{_lambda_.2} parent=0 // pred_check_branch
    %10 = sbr.rel (0) target = $region9
  $region8: #{_lambda_.2} parent=0 // pred_region
    _
  $region9: #{_lambda_.2} parent=0 // pred_fallthru
    _
  %v11 = vld [vmem:[%s0] sm:$0xff]
  %v12 = vld [vmem:[%s0 + $0x8] sm:$0xff]
  %v13 = vld [vmem:[%s0 + $0x10] sm:$0xff]
  %v14 = vld [vmem:[%s0 + $0x18] sm:$0xff]
  %v15 = vld [vmem:[%s0 + $0x20] sm:$0xff]
  %v16 = vld [vmem:[%s0 + $0x28] sm:$0xff]
  %v17 = vld [vmem:[%s0 + $0x30] sm:$0xff]
  %v18 = vld [vmem:[%s0 + $0x38] sm:$0xff]
  %v19 = vld [vmem:[%s1] sm:$0xff]
  %v20 = vld [vmem:[%s1 + $0x8] sm:$0xff]
  %v21 = vld [vmem:[%s1 + $0x10] sm:$0xff]
  %v22 = vld [vmem:[%s1 + $0x18] sm:$0xff]
  %vm23 = vcmask 261120
  %v25 = vsel %vm23, %v11, 0
  %v28 = vsel %vm23, %v12, 0
  %v31 = vsel %vm23, %v13, 0
  %v34 = vsel %vm23, %v14, 0
  %v37 = vsel %vm23, %v15, 0
  %v40 = vsel %vm23, %v16, 0
  %v43 = vsel %vm23, %v17, 0
  %v46 = vsel %vm23, %v18, 0
  %48 = vmatprep.subr.mxu0 0.0
  %49 = vmatpush1.msra.mxu0 0.0
  %50 = vmatprep.subr.mxu0 0.0
  %51 = vmatpush1.msra.mxu0 0.0
  %52 = vmatprep.subr.mxu0 0.0
  %53 = vmatpush1.msra.mxu0 0.0
  %54 = vmatprep.subr.mxu0 0.0
  %55 = vmatpush1.msra.mxu0 0.0
  %56 = vmatprep.subr.mxu0 0.0
  %57 = vmatpush1.msra.mxu0 0.0
  %58 = vmatprep.subr.mxu0 0.0
  %59 = vmatpush1.msra.mxu0 0.0
  %60 = vmatprep.subr.mxu0 0.0
  %61 = vmatpush1.msra.mxu0 0.0
  %62 = vmatprep.subr.mxu0 0.0
  %63 = vmatpush1.msra.mxu0 0.0
  %64 = vmatprep.subr.mxu0 0.0
  %65 = vmatpush1.msra.mxu0 0.0
  %66 = vmatprep.subr.mxu0 0.0
  %67 = vmatpush1.msra.mxu0 0.0
  %68 = vmatprep.subr.mxu0 0.0
  %69 = vmatpush1.msra.mxu0 0.0
  %70 = vmatprep.subr.mxu0 0.0
  %71 = vmatpush1.msra.mxu0 0.0
  %72 = vmatprep.subr.mxu0 0.0
  %73 = vmatpush1.msra.mxu0 %v22
  %74 = vmatprep.subr.mxu0 0.0
  %75 = vmatpush1.msra.mxu0 %v21
  %76 = vmatprep.subr.mxu0 0.0
  %77 = vmatpush1.msra.mxu0 %v20
  %78 = vmatprep.subr.mxu0 0.0
  %79 = vmatpush1.msra.mxu0 %v19
  %80 = vmatprep.subr.mxu0 0.0
  %81 = vmatpush2.msra.mxu0 0.0
  %82 = vmatprep.subr.mxu0 0.0
  %83 = vmatpush2.msra.mxu0 0.0
  %84 = vmatprep.subr.mxu0 0.0
  %85 = vmatpush2.msra.mxu0 0.0
  %86 = vmatprep.subr.mxu0 0.0
  %87 = vmatpush2.msra.mxu0 0.0
  %88 = vmatprep.subr.mxu0 0.0
  %89 = vmatpush2.msra.mxu0 0.0
  %90 = vmatprep.subr.mxu0 0.0
  %91 = vmatpush2.msra.mxu0 0.0
  %92 = vmatprep.subr.mxu0 0.0
  %93 = vmatpush2.msra.mxu0 0.0
  %94 = vmatprep.subr.mxu0 0.0
  %95 = vmatpush2.msra.mxu0 0.0
  %96 = vmatprep.subr.mxu0 0.0
  %97 = vmatpush2.msra.mxu0 0.0
  %98 = vmatprep.subr.mxu0 0.0
  %99 = vmatpush2.msra.mxu0 0.0
  %100 = vmatprep.subr.mxu0 0.0
  %101 = vmatpush2.msra.mxu0 0.0
  %102 = vmatprep.subr.mxu0 0.0
  %103 = vmatpush2.msra.mxu0 0.0
  %104 = vmatprep.subr.mxu0 0.0
  %105 = vmatpush2.msra.mxu0 0.0
  %106 = vmatprep.subr.mxu0 0.0
  %107 = vmatpush2.msra.mxu0 0.0
  %108 = vmatprep.subr.mxu0 0.0
  %109 = vmatpush2.msra.mxu0 0.0
  %110 = vmatprep.subr.mxu0 0.0
  %111 = vmatpush2.msra.mxu0 0.0
  %112 = vmatprep.mubr.f32.mxu0 0.0
  %113 = vmatmul.mubr.f32.gmra.mxu0 %v25
  %v114 = vpop.f32.mrf.mxu0
  %v115 = vadd.f32 0.0, %v114
  %v116 = vpop.f32.mrf.mxu0
  %117 = vmatprep.mubr.f32.mxu0 0.0
  %118 = vmatmul.mubr.f32.gmra.mxu0 %v28
  %v119 = vpop.f32.mrf.mxu0
  %v120 = vadd.f32 0.0, %v119
  %v121 = vpop.f32.mrf.mxu0
  %122 = vmatprep.mubr.f32.mxu0 0.0
  %123 = vmatmul.mubr.f32.gmra.mxu0 %v31
  %v124 = vpop.f32.mrf.mxu0
  %v125 = vadd.f32 0.0, %v124
  %v126 = vpop.f32.mrf.mxu0
  %127 = vmatprep.mubr.f32.mxu0 0.0
  %128 = vmatmul.mubr.f32.gmra.mxu0 %v34
  %v129 = vpop.f32.mrf.mxu0
  %v130 = vadd.f32 0.0, %v129
  %v131 = vpop.f32.mrf.mxu0
  %132 = vmatprep.mubr.f32.mxu0 0.0
  %133 = vmatmul.mubr.f32.gmra.mxu0 %v37
  %v134 = vpop.f32.mrf.mxu0
  %v135 = vadd.f32 0.0, %v134
  %v136 = vpop.f32.mrf.mxu0
  %137 = vmatprep.mubr.f32.mxu0 0.0
  %138 = vmatmul.mubr.f32.gmra.mxu0 %v40
  %v139 = vpop.f32.mrf.mxu0
  %v140 = vadd.f32 0.0, %v139
  %v141 = vpop.f32.mrf.mxu0
  %142 = vmatprep.mubr.f32.mxu0 0.0
  %143 = vmatmul.mubr.f32.gmra.mxu0 %v43
  %v144 = vpop.f32.mrf.mxu0
  %v145 = vadd.f32 0.0, %v144
  %v146 = vpop.f32.mrf.mxu0
  %147 = vmatprep.mubr.f32.mxu0 0.0
  %148 = vmatmul.mubr.f32.gmra.mxu0 %v46
  %v149 = vpop.f32.mrf.mxu0
  %v150 = vadd.f32 0.0, %v149
  %v151 = vpop.f32.mrf.mxu0
  %152 = vdwg.mxu0
  %153 = vst [vmem:[%s2] sm:$0xff] %v115
  %154 = vst [vmem:[%s2 + $0x8] sm:$0xff] %v120
  %155 = vst [vmem:[%s2 + $0x10] sm:$0xff] %v125
  %156 = vst [vmem:[%s2 + $0x18] sm:$0xff] %v130
  %157 = vst [vmem:[%s2 + $0x20] sm:$0xff] %v135
  %158 = vst [vmem:[%s2 + $0x28] sm:$0xff] %v140
  %159 = vst [vmem:[%s2 + $0x30] sm:$0xff] %v145
  %160 = vst [vmem:[%s2 + $0x38] sm:$0xff] %v150
  // Predicated region
  $region10: #{_lambda_.2} parent=0 // pred_check
    _
  $region11: #{_lambda_.2} parent=0 // pred_check_branch
    %162 = sbr.rel (0) target = $region13
  $region12: #{_lambda_.2} parent=0 // pred_region
    _
  $region13: #{_lambda_.2} parent=0 // pred_fallthru
    _
  // Predicated region
  $region14: #{_lambda_.2} parent=0 // pred_check
    _
  $region15: #{_lambda_.2} parent=0 // pred_check_branch
    %164 = sbr.rel (0) target = $region17
  $region16: #{_lambda_.2} parent=0 // pred_region
    _
  $region17: #{_lambda_.2} parent=0 // pred_fallthru
    _

// kernel: reverse.1
$region0: #{reverse.1}
  #allocation0 [shape = 's32[1]{0}', space=sflag, size = 0x4, scoped, tag = 'scoped memory for reverse.1']
  %s0 = inlined_call_operand.vmem [shape: f32[4,64,16,7], index: 0, kind: input, shape index: {}]
  %s1 = inlined_call_operand.vmem [shape: f32[4,64,16,7], index: 1, kind: output, shape index: {}]
  %s2 = scalar_lea.vmem %s0, 96
  %v3 = vld [vmem:[%s2] sm:$0xff]
  %4 = vst [vmem:[%s1] sm:$0xff] %v3
  %s5 = scalar_lea.vmem %s0, 208
  %v6 = vld [vmem:[%s5] sm:$0xff]
  %s7 = scalar_lea.vmem %s1, 112
  %8 = vst [vmem:[%s7] sm:$0xff] %v6
  %s9 = scalar_lea.vmem %s0, 320
  %v10 = vld [vmem:[%s9] sm:$0xff]
  %s11 = scalar_lea.vmem %s1, 224
  %12 = vst [vmem:[%s11] sm:$0xff] %v10
  %s13 = scalar_lea.vmem %s0, 432
  %v14 = vld [vmem:[%s13] sm:$0xff]
  %s15 = scalar_lea.vmem %s1, 336
  %16 = vst [vmem:[%s15] sm:$0xff] %v14
  %s17 = scalar_lea.vmem %s0, 80
  %v18 = vld [vmem:[%s17] sm:$0xff]
  %s19 = scalar_lea.vmem %s1, 16
  %20 = vst [vmem:[%s19] sm:$0xff] %v18
  %s21 = scalar_lea.vmem %s0, 192
  %v22 = vld [vmem:[%s21] sm:$0xff]
  %s23 = scalar_lea.vmem %s1, 128
  %24 = vst [vmem:[%s23] sm:$0xff] %v22
  %s25 = scalar_lea.vmem %s0, 304
  %v26 = vld [vmem:[%s25] sm:$0xff]
  %s27 = scalar_lea.vmem %s1, 240
  %28 = vst [vmem:[%s27] sm:$0xff] %v26
  %s29 = scalar_lea.vmem %s0, 416
  %v30 = vld [vmem:[%s29] sm:$0xff]
  %s31 = scalar_lea.vmem %s1, 352
  %32 = vst [vmem:[%s31] sm:$0xff] %v30
  %s33 = scalar_lea.vmem %s0, 64
  %v34 = vld [vmem:[%s33] sm:$0xff]
  %s35 = scalar_lea.vmem %s1, 32
  %36 = vst [vmem:[%s35] sm:$0xff] %v34
  %s37 = scalar_lea.vmem %s0, 176
  %v38 = vld [vmem:[%s37] sm:$0xff]
  %s39 = scalar_lea.vmem %s1, 144
  %40 = vst [vmem:[%s39] sm:$0xff] %v38
  %s41 = scalar_lea.vmem %s0, 288
  %v42 = vld [vmem:[%s41] sm:$0xff]
  %s43 = scalar_lea.vmem %s1, 256
  %44 = vst [vmem:[%s43] sm:$0xff] %v42
  %s45 = scalar_lea.vmem %s0, 400
  %v46 = vld [vmem:[%s45] sm:$0xff]
  %s47 = scalar_lea.vmem %s1, 368
  %48 = vst [vmem:[%s47] sm:$0xff] %v46
  %s49 = scalar_lea.vmem %s0, 48
  %v50 = vld [vmem:[%s49] sm:$0xff]
  %s51 = scalar_lea.vmem %s1, 48
  %52 = vst [vmem:[%s51] sm:$0xff] %v50
  %s53 = scalar_lea.vmem %s0, 160
  %v54 = vld [vmem:[%s53] sm:$0xff]
  %s55 = scalar_lea.vmem %s1, 160
  %56 = vst [vmem:[%s55] sm:$0xff] %v54
  %s57 = scalar_lea.vmem %s0, 272
  %v58 = vld [vmem:[%s57] sm:$0xff]
  %s59 = scalar_lea.vmem %s1, 272
  %60 = vst [vmem:[%s59] sm:$0xff] %v58
  %s61 = scalar_lea.vmem %s0, 384
  %v62 = vld [vmem:[%s61] sm:$0xff]
  %s63 = scalar_lea.vmem %s1, 384
  %64 = vst [vmem:[%s63] sm:$0xff] %v62
  %s65 = scalar_lea.vmem %s0, 32
  %v66 = vld [vmem:[%s65] sm:$0xff]
  %s67 = scalar_lea.vmem %s1, 64
  %68 = vst [vmem:[%s67] sm:$0xff] %v66
  %s69 = scalar_lea.vmem %s0, 144
  %v70 = vld [vmem:[%s69] sm:$0xff]
  %s71 = scalar_lea.vmem %s1, 176
  %72 = vst [vmem:[%s71] sm:$0xff] %v70
  %s73 = scalar_lea.vmem %s0, 256
  %v74 = vld [vmem:[%s73] sm:$0xff]
  %s75 = scalar_lea.vmem %s1, 288
  %76 = vst [vmem:[%s75] sm:$0xff] %v74
  %s77 = scalar_lea.vmem %s0, 368
  %v78 = vld [vmem:[%s77] sm:$0xff]
  %s79 = scalar_lea.vmem %s1, 400
  %80 = vst [vmem:[%s79] sm:$0xff] %v78
  %s81 = scalar_lea.vmem %s0, 16
  %v82 = vld [vmem:[%s81] sm:$0xff]
  %s83 = scalar_lea.vmem %s1, 80
  %84 = vst [vmem:[%s83] sm:$0xff] %v82
  %s85 = scalar_lea.vmem %s0, 128
  %v86 = vld [vmem:[%s85] sm:$0xff]
  %s87 = scalar_lea.vmem %s1, 192
  %88 = vst [vmem:[%s87] sm:$0xff] %v86
  %s89 = scalar_lea.vmem %s0, 240
  %v90 = vld [vmem:[%s89] sm:$0xff]
  %s91 = scalar_lea.vmem %s1, 304
  %92 = vst [vmem:[%s91] sm:$0xff] %v90
  %s93 = scalar_lea.vmem %s0, 352
  %v94 = vld [vmem:[%s93] sm:$0xff]
  %s95 = scalar_lea.vmem %s1, 416
  %96 = vst [vmem:[%s95] sm:$0xff] %v94
  %v97 = vld [vmem:[%s0] sm:$0xff]
  %s98 = scalar_lea.vmem %s1, 96
  %99 = vst [vmem:[%s98] sm:$0xff] %v97
  %s100 = scalar_lea.vmem %s0, 112
  %v101 = vld [vmem:[%s100] sm:$0xff]
  %s102 = scalar_lea.vmem %s1, 208
  %103 = vst [vmem:[%s102] sm:$0xff] %v101
  %s104 = scalar_lea.vmem %s0, 224
  %v105 = vld [vmem:[%s104] sm:$0xff]
  %s106 = scalar_lea.vmem %s1, 320
  %107 = vst [vmem:[%s106] sm:$0xff] %v105
  %s108 = scalar_lea.vmem %s0, 336
  %v109 = vld [vmem:[%s108] sm:$0xff]
  %s110 = scalar_lea.vmem %s1, 432
  %111 = vst [vmem:[%s110] sm:$0xff] %v109
  %s112 = scalar_lea.vmem %s0, 104
  %v113 = vld [vmem:[%s112] sm:$0xff]
  %s114 = scalar_lea.vmem %s1, 8
  %115 = vst [vmem:[%s114] sm:$0xff] %v113
  %s116 = scalar_lea.vmem %s0, 216
  %v117 = vld [vmem:[%s116] sm:$0xff]
  %s118 = scalar_lea.vmem %s1, 120
  %119 = vst [vmem:[%s118] sm:$0xff] %v117
  %s120 = scalar_lea.vmem %s0, 328
  %v121 = vld [vmem:[%s120] sm:$0xff]
  %s122 = scalar_lea.vmem %s1, 232
  %123 = vst [vmem:[%s122] sm:$0xff] %v121
  %s124 = scalar_lea.vmem %s0, 440
  %v125 = vld [vmem:[%s124] sm:$0xff]
  %s126 = scalar_lea.vmem %s1, 344
  %127 = vst [vmem:[%s126] sm:$0xff] %v125
  %s128 = scalar_lea.vmem %s0, 88
  %v129 = vld [vmem:[%s128] sm:$0xff]
  %s130 = scalar_lea.vmem %s1, 24
  %131 = vst [vmem:[%s130] sm:$0xff] %v129
  %s132 = scalar_lea.vmem %s0, 200
  %v133 = vld [vmem:[%s132] sm:$0xff]
  %s134 = scalar_lea.vmem %s1, 136
  %135 = vst [vmem:[%s134] sm:$0xff] %v133
  %s136 = scalar_lea.vmem %s0, 312
  %v137 = vld [vmem:[%s136] sm:$0xff]
  %s138 = scalar_lea.vmem %s1, 248
  %139 = vst [vmem:[%s138] sm:$0xff] %v137
  %s140 = scalar_lea.vmem %s0, 424
  %v141 = vld [vmem:[%s140] sm:$0xff]
  %s142 = scalar_lea.vmem %s1, 360
  %143 = vst [vmem:[%s142] sm:$0xff] %v141
  %s144 = scalar_lea.vmem %s0, 72
  %v145 = vld [vmem:[%s144] sm:$0xff]
  %s146 = scalar_lea.vmem %s1, 40
  %147 = vst [vmem:[%s146] sm:$0xff] %v145
  %s148 = scalar_lea.vmem %s0, 184
  %v149 = vld [vmem:[%s148] sm:$0xff]
  %s150 = scalar_lea.vmem %s1, 152
  %151 = vst [vmem:[%s150] sm:$0xff] %v149
  %s152 = scalar_lea.vmem %s0, 296
  %v153 = vld [vmem:[%s152] sm:$0xff]
  %s154 = scalar_lea.vmem %s1, 264
  %155 = vst [vmem:[%s154] sm:$0xff] %v153
  %s156 = scalar_lea.vmem %s0, 408
  %v157 = vld [vmem:[%s156] sm:$0xff]
  %s158 = scalar_lea.vmem %s1, 376
  %159 = vst [vmem:[%s158] sm:$0xff] %v157
  %s160 = scalar_lea.vmem %s0, 56
  %v161 = vld [vmem:[%s160] sm:$0xff]
  %s162 = scalar_lea.vmem %s1, 56
  %163 = vst [vmem:[%s162] sm:$0xff] %v161
  %s164 = scalar_lea.vmem %s0, 168
  %v165 = vld [vmem:[%s164] sm:$0xff]
  %s166 = scalar_lea.vmem %s1, 168
  %167 = vst [vmem:[%s166] sm:$0xff] %v165
  %s168 = scalar_lea.vmem %s0, 280
  %v169 = vld [vmem:[%s168] sm:$0xff]
  %s170 = scalar_lea.vmem %s1, 280
  %171 = vst [vmem:[%s170] sm:$0xff] %v169
  %s172 = scalar_lea.vmem %s0, 392
  %v173 = vld [vmem:[%s172] sm:$0xff]
  %s174 = scalar_lea.vmem %s1, 392
  %175 = vst [vmem:[%s174] sm:$0xff] %v173
  %s176 = scalar_lea.vmem %s0, 40
  %v177 = vld [vmem:[%s176] sm:$0xff]
  %s178 = scalar_lea.vmem %s1, 72
  %179 = vst [vmem:[%s178] sm:$0xff] %v177
  %s180 = scalar_lea.vmem %s0, 152
  %v181 = vld [vmem:[%s180] sm:$0xff]
  %s182 = scalar_lea.vmem %s1, 184
  %183 = vst [vmem:[%s182] sm:$0xff] %v181
  %s184 = scalar_lea.vmem %s0, 264
  %v185 = vld [vmem:[%s184] sm:$0xff]
  %s186 = scalar_lea.vmem %s1, 296
  %187 = vst [vmem:[%s186] sm:$0xff] %v185
  %s188 = scalar_lea.vmem %s0, 376
  %v189 = vld [vmem:[%s188] sm:$0xff]
  %s190 = scalar_lea.vmem %s1, 408
  %191 = vst [vmem:[%s190] sm:$0xff] %v189
  %s192 = scalar_lea.vmem %s0, 24
  %v193 = vld [vmem:[%s192] sm:$0xff]
  %s194 = scalar_lea.vmem %s1, 88
  %195 = vst [vmem:[%s194] sm:$0xff] %v193
  %s196 = scalar_lea.vmem %s0, 136
  %v197 = vld [vmem:[%s196] sm:$0xff]
  %s198 = scalar_lea.vmem %s1, 200
  %199 = vst [vmem:[%s198] sm:$0xff] %v197
  %s200 = scalar_lea.vmem %s0, 248
  %v201 = vld [vmem:[%s200] sm:$0xff]
  %s202 = scalar_lea.vmem %s1, 312
  %203 = vst [vmem:[%s202] sm:$0xff] %v201
  %s204 = scalar_lea.vmem %s0, 360
  %v205 = vld [vmem:[%s204] sm:$0xff]
  %s206 = scalar_lea.vmem %s1, 424
  %207 = vst [vmem:[%s206] sm:$0xff] %v205
  %s208 = scalar_lea.vmem %s0, 8
  %v209 = vld [vmem:[%s208] sm:$0xff]
  %s210 = scalar_lea.vmem %s1, 104
  %211 = vst [vmem:[%s210] sm:$0xff] %v209
  %s212 = scalar_lea.vmem %s0, 120
  %v213 = vld [vmem:[%s212] sm:$0xff]
  %s214 = scalar_lea.vmem %s1, 216
  %215 = vst [vmem:[%s214] sm:$0xff] %v213
  %s216 = scalar_lea.vmem %s0, 232
  %v217 = vld [vmem:[%s216] sm:$0xff]
  %s218 = scalar_lea.vmem %s1, 328
  %219 = vst [vmem:[%s218] sm:$0xff] %v217
  %s220 = scalar_lea.vmem %s0, 344
  %v221 = vld [vmem:[%s220] sm:$0xff]
  %s222 = scalar_lea.vmem %s1, 440
  %223 = vst [vmem:[%s222] sm:$0xff] %v221

// kernel: _lambda_.3
$region0: #{_lambda_.3}
  #allocation0 [shape = 'u32[]', space=smem, size = 0x4, offset = 0x4, fixed_abs, tag = 'smem constant byte address 0x4 - core index']
  #allocation1 [shape = 'u32[144,128]{1,0:T(1,128)}', space=vmem, size = 0x12000, scoped, tag = 'internal scratch']
  %s0 = inlined_call_operand.vmem [shape: f32[32,32], index: 0, kind: input, shape index: {}]
  %s1 = inlined_call_operand.vmem [shape: f32[32,256], index: 1, kind: input, shape index: {}, may-alias: {1,2}]
  %s2 = inlined_call_operand.vmem [shape: f32[32,256], index: 2, kind: input, shape index: {}, may-alias: {1,2}]
  %s3 = inlined_call_operand.vmem [shape: f32[32,128], index: 3, kind: output, shape index: {}]
  %s4 = sld [smem:[#allocation0]]
  $region98: #{_lambda_.3} parent=0
    _
  %s6 = ssub.s32 1, %s4
  %s7 = scalar_select 0, %s6, %s4
  $region1: #{_lambda_.3} parent=0
    #allocation2 [shape = 'u8[16384]{0}', space=vmem, size = 0x4000, scoped, tag = 'input window, operand 1, single buffered']
    #allocation3 [shape = 'u8[16384]{0}', space=vmem, size = 0x4000, scoped, tag = 'input window, operand 2, single buffered']
    // Predicated region
    $region2: #{_lambda_.3} parent=1 // pred_check
      _
    $region3: #{_lambda_.3} parent=1 // pred_check_branch
      %9 = sbr.rel (0) target = $region5
    $region4: #{_lambda_.3} parent=1 // pred_region
      _
    $region5: #{_lambda_.3} parent=1 // pred_fallthru
      _
    // Predicated region
    $region6: #{_lambda_.3} parent=1 // pred_check
      _
    $region7: #{_lambda_.3} parent=1 // pred_check_branch
      %11 = sbr.rel (0) target = $region9
    $region8: #{_lambda_.3} parent=1 // pred_region
      // Predicated region
      $region10: #{_lambda_.3} parent=8 // pred_check
        _
      $region11: #{_lambda_.3} parent=8 // pred_check_branch
        %13 = sbr.rel (0) target = $region13
      $region12: #{_lambda_.3} parent=8 // pred_region
        // Predicated region
        $region14: #{_lambda_.3} parent=12 // pred_check
          _
        $region15: #{_lambda_.3} parent=12 // pred_check_branch
          %15 = sbr.rel (0) target = $region17
        $region16: #{_lambda_.3} parent=12 // pred_region
          // Predicated region
          $region29: #{_lambda_.3} parent=16 // pred_check
            _
          $region30: #{_lambda_.3} parent=16 // pred_check_branch
            %37 = sbr.rel (0) target = $region32
          $region31: #{_lambda_.3} parent=16 // pred_region
            loop: start=0, step=1, limit=1
            $region33: #{_lambda_.3} parent=31 // loop_pre_header
              _
            $region34: #{_lambda_.3} parent=31 // loop_header
              %s39 = sphi 0, %s43
              %p40 = scmp.ge.s32.totalorder %s39, 1
              %s44 = sphi %s1, %s1
              %s45 = sphi [#allocation2], [#allocation2]
            $region35: #{_lambda_.3} parent=31 // loop_header_branch
              %42 = sbr.rel (%p40) target = $region39
            $region36: #{_lambda_.3} parent=31 // loop_body
              %v46 = vld [vmem:[%s44] sm:$0xff]
              %47 = vst [vmem:[%s45] sm:$0xff] %v46
              %v48 = vld [vmem:[%s44 + $0x10] sm:$0xff]
              %49 = vst [vmem:[%s45 + $0x8] sm:$0xff] %v48
              %v50 = vld [vmem:[%s44 + $0x20] sm:$0xff]
              %51 = vst [vmem:[%s45 + $0x10] sm:$0xff] %v50
              %v52 = vld [vmem:[%s44 + $0x30] sm:$0xff]
              %53 = vst [vmem:[%s45 + $0x18] sm:$0xff] %v52
            $region37: #{_lambda_.3} parent=31 // loop_footer
              %s43 = sadd.s32 1, %s39
            $region38: #{_lambda_.3} parent=31 // loop_footer_branch
              %38 = sbr.rel target = $region34
            $region39: #{_lambda_.3} parent=31 // loop_exit
              _
          $region32: #{_lambda_.3} parent=16 // pred_fallthru
            _
          // Predicated region
          $region40: #{_lambda_.3} parent=16 // pred_check
            _
          $region41: #{_lambda_.3} parent=16 // pred_check_branch
            %55 = sbr.rel target = $region43
          $region42: #{_lambda_.3} parent=16 // pred_region
            _
          $region43: #{_lambda_.3} parent=16 // pred_fallthru
            _
        $region17: #{_lambda_.3} parent=12 // pred_fallthru
          _
        // Predicated region
        $region18: #{_lambda_.3} parent=12 // pred_check
          _
        $region19: #{_lambda_.3} parent=12 // pred_check_branch
          %17 = sbr.rel target = $region21
        $region20: #{_lambda_.3} parent=12 // pred_region
          %s19 = ssub.s32 256, 1
          loop: start=0, step=1, limit=1
          $region22: #{_lambda_.3} parent=20 // loop_pre_header
            _
          $region23: #{_lambda_.3} parent=20 // loop_header
            %s21 = sphi 0, %s25
            %p22 = scmp.ge.s32.totalorder %s21, 1
            %s26 = sphi %s1, %s1
            %s27 = sphi [#allocation2], [#allocation2]
          $region24: #{_lambda_.3} parent=20 // loop_header_branch
            %24 = sbr.rel (%p22) target = $region28
          $region25: #{_lambda_.3} parent=20 // loop_body
            %v28 = vld [vmem:[%s26] sm:%s19]
            %29 = vst [vmem:[%s27] sm:%s19] %v28
            %v30 = vld [vmem:[%s26 + $0x10] sm:%s19]
            %31 = vst [vmem:[%s27 + $0x8] sm:%s19] %v30
            %v32 = vld [vmem:[%s26 + $0x20] sm:%s19]
            %33 = vst [vmem:[%s27 + $0x10] sm:%s19] %v32
            %v34 = vld [vmem:[%s26 + $0x30] sm:%s19]
            %35 = vst [vmem:[%s27 + $0x18] sm:%s19] %v34
          $region26: #{_lambda_.3} parent=20 // loop_footer
            %s25 = sadd.s32 1, %s21
          $region27: #{_lambda_.3} parent=20 // loop_footer_branch
            %20 = sbr.rel target = $region23
          $region28: #{_lambda_.3} parent=20 // loop_exit
            _
        $region21: #{_lambda_.3} parent=12 // pred_fallthru
          _
      $region13: #{_lambda_.3} parent=8 // pred_fallthru
        _
      %56 = vnop
    $region9: #{_lambda_.3} parent=1 // pred_fallthru
      _
    // Predicated region
    $region44: #{_lambda_.3} parent=1 // pred_check
      _
    $region45: #{_lambda_.3} parent=1 // pred_check_branch
      %58 = sbr.rel (0) target = $region47
    $region46: #{_lambda_.3} parent=1 // pred_region
      %s59 = sadd.s32 0, 1
      %s60 = smul.addr %s59, 8
      %s61 = scalar_lea.vmem %s2, %s60
      // Predicated region
      $region48: #{_lambda_.3} parent=46 // pred_check
        _
      $region49: #{_lambda_.3} parent=46 // pred_check_branch
        %63 = sbr.rel (0) target = $region51
      $region50: #{_lambda_.3} parent=46 // pred_region
        // Predicated region
        $region52: #{_lambda_.3} parent=50 // pred_check
          _
        $region53: #{_lambda_.3} parent=50 // pred_check_branch
          %65 = sbr.rel (0) target = $region55
        $region54: #{_lambda_.3} parent=50 // pred_region
          // Predicated region
          $region67: #{_lambda_.3} parent=54 // pred_check
            _
          $region68: #{_lambda_.3} parent=54 // pred_check_branch
            %87 = sbr.rel (0) target = $region70
          $region69: #{_lambda_.3} parent=54 // pred_region
            loop: start=0, step=1, limit=1
            $region71: #{_lambda_.3} parent=69 // loop_pre_header
              _
            $region72: #{_lambda_.3} parent=69 // loop_header
              %s89 = sphi 0, %s93
              %p90 = scmp.ge.s32.totalorder %s89, 1
              %s94 = sphi %s61, %s61
              %s95 = sphi [#allocation3], [#allocation3]
            $region73: #{_lambda_.3} parent=69 // loop_header_branch
              %92 = sbr.rel (%p90) target = $region77
            $region74: #{_lambda_.3} parent=69 // loop_body
              %v96 = vld [vmem:[%s94] sm:$0xff]
              %97 = vst [vmem:[%s95] sm:$0xff] %v96
              %v98 = vld [vmem:[%s94 + $0x10] sm:$0xff]
              %99 = vst [vmem:[%s95 + $0x8] sm:$0xff] %v98
              %v100 = vld [vmem:[%s94 + $0x20] sm:$0xff]
              %101 = vst [vmem:[%s95 + $0x10] sm:$0xff] %v100
              %v102 = vld [vmem:[%s94 + $0x30] sm:$0xff]
              %103 = vst [vmem:[%s95 + $0x18] sm:$0xff] %v102
            $region75: #{_lambda_.3} parent=69 // loop_footer
              %s93 = sadd.s32 1, %s89
            $region76: #{_lambda_.3} parent=69 // loop_footer_branch
              %88 = sbr.rel target = $region72
            $region77: #{_lambda_.3} parent=69 // loop_exit
              _
          $region70: #{_lambda_.3} parent=54 // pred_fallthru
            _
          // Predicated region
          $region78: #{_lambda_.3} parent=54 // pred_check
            _
          $region79: #{_lambda_.3} parent=54 // pred_check_branch
            %105 = sbr.rel target = $region81
          $region80: #{_lambda_.3} parent=54 // pred_region
            _
          $region81: #{_lambda_.3} parent=54 // pred_fallthru
            _
        $region55: #{_lambda_.3} parent=50 // pred_fallthru
          _
        // Predicated region
        $region56: #{_lambda_.3} parent=50 // pred_check
          _
        $region57: #{_lambda_.3} parent=50 // pred_check_branch
          %67 = sbr.rel target = $region59
        $region58: #{_lambda_.3} parent=50 // pred_region
          %s69 = ssub.s32 256, 1
          loop: start=0, step=1, limit=1
          $region60: #{_lambda_.3} parent=58 // loop_pre_header
            _
          $region61: #{_lambda_.3} parent=58 // loop_header
            %s71 = sphi 0, %s75
            %p72 = scmp.ge.s32.totalorder %s71, 1
            %s76 = sphi %s61, %s61
            %s77 = sphi [#allocation3], [#allocation3]
          $region62: #{_lambda_.3} parent=58 // loop_header_branch
            %74 = sbr.rel (%p72) target = $region66
          $region63: #{_lambda_.3} parent=58 // loop_body
            %v78 = vld [vmem:[%s76] sm:%s69]
            %79 = vst [vmem:[%s77] sm:%s69] %v78
            %v80 = vld [vmem:[%s76 + $0x10] sm:%s69]
            %81 = vst [vmem:[%s77 + $0x8] sm:%s69] %v80
            %v82 = vld [vmem:[%s76 + $0x20] sm:%s69]
            %83 = vst [vmem:[%s77 + $0x10] sm:%s69] %v82
            %v84 = vld [vmem:[%s76 + $0x30] sm:%s69]
            %85 = vst [vmem:[%s77 + $0x18] sm:%s69] %v84
          $region64: #{_lambda_.3} parent=58 // loop_footer
            %s75 = sadd.s32 1, %s71
          $region65: #{_lambda_.3} parent=58 // loop_footer_branch
            %70 = sbr.rel target = $region61
          $region66: #{_lambda_.3} parent=58 // loop_exit
            _
        $region59: #{_lambda_.3} parent=50 // pred_fallthru
          _
      $region51: #{_lambda_.3} parent=46 // pred_fallthru
        _
      %106 = vnop
    $region47: #{_lambda_.3} parent=1 // pred_fallthru
      _
    // Predicated region
    $region82: #{_lambda_.3} parent=1 // pred_check
      _
    $region83: #{_lambda_.3} parent=1 // pred_check_branch
      %108 = sbr.rel (0) target = $region85
    $region84: #{_lambda_.3} parent=1 // pred_region
      _
    $region85: #{_lambda_.3} parent=1 // pred_fallthru
      _
    // Predicated region
    $region86: #{_lambda_.3} parent=1 // pred_check
      _
    $region87: #{_lambda_.3} parent=1 // pred_check_branch
      %110 = sbr.rel (0) target = $region89
    $region88: #{_lambda_.3} parent=1 // pred_region
      _
    $region89: #{_lambda_.3} parent=1 // pred_fallthru
      _
    %s111 = sadd.s32 0, 1
    %v112 = vld [vmem:[#allocation2] sm:$0xff]
    %v113 = vld [vmem:[#allocation2 + $0x8] sm:$0xff]
    %v114 = vld [vmem:[#allocation2 + $0x10] sm:$0xff]
    %v115 = vld [vmem:[#allocation2 + $0x18] sm:$0xff]
    %v116 = vld [vmem:[#allocation3] sm:$0xff]
    %v117 = vld [vmem:[#allocation3 + $0x8] sm:$0xff]
    %v118 = vld [vmem:[#allocation3 + $0x10] sm:$0xff]
    %v119 = vld [vmem:[#allocation3 + $0x18] sm:$0xff]
    %v120 = vmul.f32 %v112, %v112
    %v121 = vmul.f32 %v113, %v113
    %v122 = vmul.f32 %v114, %v114
    %v123 = vmul.f32 %v115, %v115
    %v124 = vmul.f32 %v116, %v116
    %v125 = vmul.f32 %v117, %v117
    %v126 = vmul.f32 %v118, %v118
    %v127 = vmul.f32 %v119, %v119
    %v128 = vadd.f32 %v120, %v124
    %v129 = vadd.f32 %v121, %v125
    %v130 = vadd.f32 %v122, %v126
    %v131 = vadd.f32 %v123, %v127
    %v132 = vrsqrt.pop %v128
    %v133 = vmul.f32 %v128, %v132
    %vm134 = vcmp.eq.f32.partialorder %v128, inf
    %v135 = vsel %vm134, %v128, %v133
    %vm136 = vcmp.eq.f32.partialorder %v128, 0.0
    %v137 = vand.u32 %v128, 2147483648
    %v138 = vsel %vm136, %v137, %v135
    %v139 = vrsqrt.pop %v129
    %v140 = vmul.f32 %v129, %v139
    %vm141 = vcmp.eq.f32.partialorder %v129, inf
    %v142 = vsel %vm141, %v129, %v140
    %vm143 = vcmp.eq.f32.partialorder %v129, 0.0
    %v144 = vand.u32 %v129, 2147483648
    %v145 = vsel %vm143, %v144, %v142
    %v146 = vrsqrt.pop %v130
    %v147 = vmul.f32 %v130, %v146
    %vm148 = vcmp.eq.f32.partialorder %v130, inf
    %v149 = vsel %vm148, %v130, %v147
    %vm150 = vcmp.eq.f32.partialorder %v130, 0.0
    %v151 = vand.u32 %v130, 2147483648
    %v152 = vsel %vm150, %v151, %v149
    %v153 = vrsqrt.pop %v131
    %v154 = vmul.f32 %v131, %v153
    %vm155 = vcmp.eq.f32.partialorder %v131, inf
    %v156 = vsel %vm155, %v131, %v154
    %vm157 = vcmp.eq.f32.partialorder %v131, 0.0
    %v158 = vand.u32 %v131, 2147483648
    %v159 = vsel %vm157, %v158, %v156
    %v160 = vld [vmem:[%s0] sm:$0xff]
    %v161 = vld [vmem:[%s0 + $0x8] sm:$0xff]
    %v162 = vld [vmem:[%s0 + $0x10] sm:$0xff]
    %v163 = vld [vmem:[%s0 + $0x18] sm:$0xff]
    %vm164 = vcmask 261120
    %v166 = vsel %vm164, %v160, 0
    %v169 = vsel %vm164, %v161, 0
    %v172 = vsel %vm164, %v162, 0
    %v175 = vsel %vm164, %v163, 0
    %177 = vmatprep.subr.mxu0 0.0
    %178 = vmatpush1.msra.mxu0 0.0
    %179 = vmatprep.subr.mxu0 0.0
    %180 = vmatpush1.msra.mxu0 0.0
    %181 = vmatprep.subr.mxu0 0.0
    %182 = vmatpush1.msra.mxu0 0.0
    %183 = vmatprep.subr.mxu0 0.0
    %184 = vmatpush1.msra.mxu0 0.0
    %185 = vmatprep.subr.mxu0 0.0
    %186 = vmatpush1.msra.mxu0 0.0
    %187 = vmatprep.subr.mxu0 0.0
    %188 = vmatpush1.msra.mxu0 0.0
    %189 = vmatprep.subr.mxu0 0.0
    %190 = vmatpush1.msra.mxu0 0.0
    %191 = vmatprep.subr.mxu0 0.0
    %192 = vmatpush1.msra.mxu0 0.0
    %193 = vmatprep.subr.mxu0 0.0
    %194 = vmatpush1.msra.mxu0 0.0
    %195 = vmatprep.subr.mxu0 0.0
    %196 = vmatpush1.msra.mxu0 0.0
    %197 = vmatprep.subr.mxu0 0.0
    %198 = vmatpush1.msra.mxu0 0.0
    %199 = vmatprep.subr.mxu0 0.0
    %200 = vmatpush1.msra.mxu0 0.0
    %201 = vmatprep.subr.mxu0 0.0
    %202 = vmatpush1.msra.mxu0 %v159
    %203 = vmatprep.subr.mxu0 0.0
    %204 = vmatpush1.msra.mxu0 %v152
    %205 = vmatprep.subr.mxu0 0.0
    %206 = vmatpush1.msra.mxu0 %v145
    %207 = vmatprep.subr.mxu0 0.0
    %208 = vmatpush1.msra.mxu0 %v138
    %209 = vmatprep.subr.mxu0 0.0
    %210 = vmatpush2.msra.mxu0 0.0
    %211 = vmatprep.subr.mxu0 0.0
    %212 = vmatpush2.msra.mxu0 0.0
    %213 = vmatprep.subr.mxu0 0.0
    %214 = vmatpush2.msra.mxu0 0.0
    %215 = vmatprep.subr.mxu0 0.0
    %216 = vmatpush2.msra.mxu0 0.0
    %217 = vmatprep.subr.mxu0 0.0
    %218 = vmatpush2.msra.mxu0 0.0
    %219 = vmatprep.subr.mxu0 0.0
    %220 = vmatpush2.msra.mxu0 0.0
    %221 = vmatprep.subr.mxu0 0.0
    %222 = vmatpush2.msra.mxu0 0.0
    %223 = vmatprep.subr.mxu0 0.0
    %224 = vmatpush2.msra.mxu0 0.0
    %225 = vmatprep.subr.mxu0 0.0
    %226 = vmatpush2.msra.mxu0 0.0
    %227 = vmatprep.subr.mxu0 0.0
    %228 = vmatpush2.msra.mxu0 0.0
    %229 = vmatprep.subr.mxu0 0.0
    %230 = vmatpush2.msra.mxu0 0.0
    %231 = vmatprep.subr.mxu0 0.0
    %232 = vmatpush2.msra.mxu0 0.0
    %233 = vmatprep.subr.mxu0 0.0
    %234 = vmatpush2.msra.mxu0 0.0
    %235 = vmatprep.subr.mxu0 0.0
    %236 = vmatpush2.msra.mxu0 0.0
    %237 = vmatprep.subr.mxu0 0.0
    %238 = vmatpush2.msra.mxu0 0.0
    %239 = vmatprep.subr.mxu0 0.0
    %240 = vmatpush2.msra.mxu0 0.0
    %241 = vmatprep.mubr.f32.mxu0 0.0
    %242 = vmatmul.mubr.f32.gmra.mxu0 %v166
    %v243 = vpop.f32.mrf.mxu0
    %v244 = vadd.f32 0.0, %v243
    %v245 = vpop.f32.mrf.mxu0
    %246 = vmatprep.mubr.f32.mxu0 0.0
    %247 = vmatmul.mubr.f32.gmra.mxu0 %v169
    %v248 = vpop.f32.mrf.mxu0
    %v249 = vadd.f32 0.0, %v248
    %v250 = vpop.f32.mrf.mxu0
    %251 = vmatprep.mubr.f32.mxu0 0.0
    %252 = vmatmul.mubr.f32.gmra.mxu0 %v172
    %v253 = vpop.f32.mrf.mxu0
    %v254 = vadd.f32 0.0, %v253
    %v255 = vpop.f32.mrf.mxu0
    %256 = vmatprep.mubr.f32.mxu0 0.0
    %257 = vmatmul.mubr.f32.gmra.mxu0 %v175
    %v258 = vpop.f32.mrf.mxu0
    %v259 = vadd.f32 0.0, %v258
    %v260 = vpop.f32.mrf.mxu0
    %261 = vdwg.mxu0
    %262 = vst [vmem:[%s3] sm:$0xff] %v244
    %263 = vst [vmem:[%s3 + $0x8] sm:$0xff] %v249
    %264 = vst [vmem:[%s3 + $0x10] sm:$0xff] %v254
    %265 = vst [vmem:[%s3 + $0x18] sm:$0xff] %v259
    // Predicated region
    $region90: #{_lambda_.3} parent=1 // pred_check
      _
    $region91: #{_lambda_.3} parent=1 // pred_check_branch
      %267 = sbr.rel (0) target = $region93
    $region92: #{_lambda_.3} parent=1 // pred_region
      _
    $region93: #{_lambda_.3} parent=1 // pred_fallthru
      _
    // Predicated region
    $region94: #{_lambda_.3} parent=1 // pred_check
      _
    $region95: #{_lambda_.3} parent=1 // pred_check_branch
      %269 = sbr.rel (0) target = $region97
    $region96: #{_lambda_.3} parent=1 // pred_region
      _
    $region97: #{_lambda_.3} parent=1 // pred_fallthru
      _

</llo_original>
